<compile_context>
chip_gen: v6e
topology: v6e:2x2x1
jax: 0.10.0
libtpu: 0.0.40
codegen_flags: <defaults>
</compile_context>

<pallas_src>
import numpy as np
import jax
import jax.numpy as jnp
from jax.experimental import pallas as pl
from jax.experimental.pallas import tpu as pltpu

NBASIS = 9  # as in SGBasis.__init__
# TODO(synk): only the specular_rgb=True branch (module default) is implemented.

# lobe = exp(2)..exp(10); requires_grad_(False); clamp(min=0) is a no-op (>0).
_LOBE = np.maximum(np.exp(np.arange(2, 2 + NBASIS, dtype=np.float64)), 0.0).astype(np.float32)


def _sg_kernel(v_ref, n_ref, l_ref, a_ref, w_ref, out_ref):
    """SoA kernel.

    v_ref / n_ref / l_ref / a_ref : [3, T]      (x, y, z rows; points on lanes)
    w_ref                         : [27, T]     (rows c*9+k = weight of basis k, channel c)
    out_ref                       : [6, T]      (rows 0..2 brdf RGB, rows 3..5 specular RGB)
    """
    # Per-component rows, each [1, T] and lane-dense.
    sx = v_ref[0:1, :] + l_ref[0:1, :]
    sy = v_ref[1:2, :] + l_ref[1:2, :]
    sz = v_ref[2:3, :] + l_ref[2:3, :]
    nx = n_ref[0:1, :]
    ny = n_ref[1:2, :]
    nz = n_ref[2:3, :]

    # Unrolled VPU reductions over the 3 components (no MXU, no XLU lane-reduce).
    ss = sx * sx + sy * sy + sz * sz          # |l+v|^2
    sn = sx * nx + sy * ny + sz * nz          # (l+v).n

    # F.normalize(eps=1e-12) semantics: 1/max(|s|,1e-12) == rsqrt(max(|s|^2,1e-24))
    hn1 = sn * jax.lax.rsqrt(jnp.maximum(ss, 1e-24)) - 1.0   # h.n - 1, [1, T]

    # D_k = exp(lobe_k * (h.n - 1)): 9 exps per point, reused for all 3 channels.
    d = [jnp.exp(float(_LOBE[k]) * hn1) for k in range(NBASIS)]

    for c in range(3):
        acc = w_ref[c * NBASIS : c * NBASIS + 1, :] * d[0]
        for k in range(1, NBASIS):
            acc = acc + w_ref[c * NBASIS + k : c * NBASIS + k + 1, :] * d[k]
        spec_c = jnp.maximum(acc, 0.0)                      # clamp(min=0)
        out_ref[3 + c : 4 + c, :] = spec_c                  # specular channel c
        out_ref[c : c + 1, :] = a_ref[c : c + 1, :] + spec_c  # brdf channel c


def _round_up(x, m):
    return (x + m - 1) // m * m


def sg_basis_forward(v, n, l, albedo, weights, *, max_lane_tile=16384):
    """Pallas implementation of SGBasis.forward (specular_rgb=True).

    v, n, l, albedo: [N, 3] float32
    weights:         [N, 3 * NBASIS] float32
    returns (brdf [N, 3], specular [N, 3])
    """
    N = int(v.shape[0])
    nb = weights.shape[1] // 3
    assert nb == NBASIS

    # SoA layout: feature components on sublanes, points on the 128-lane axis.
    # (Wrapper-side transposes are layout plumbing, not compute.)
    vt, nt, lt, at = v.T, n.T, l.T, albedo.T          # [3, N]
    wt = weights.T                                    # [27, N]

    if N <= 256:
        tile = N                                      # block == full dim: no 128-alignment needed
    else:
        # >=2 grid steps (v7x dual-TC sharding); lane tile a multiple of 128.
        tile = min(max_lane_tile, _round_up(-(-N // 2), 128))
    grid = pl.cdiv(N, tile)

    spec3 = pl.BlockSpec((3, tile), lambda i: (0, i))
    specw = pl.BlockSpec((3 * NBASIS, tile), lambda i: (0, i))
    spec_out = pl.BlockSpec((6, tile), lambda i: (0, i))

    out = pl.pallas_call(
        _sg_kernel,
        out_shape=jax.ShapeDtypeStruct((6, N), jnp.float32),
        grid_spec=pltpu.PrefetchScalarGridSpec(
            num_scalar_prefetch=0,
            grid=(grid,),
            in_specs=[spec3, spec3, spec3, spec3, specw],
            out_specs=spec_out,
        ),
        compiler_params=pltpu.CompilerParams(
            dimension_semantics=("parallel",),   # independent lane tiles; v7x shards over TCs
        ),
    )(vt, nt, lt, at, wt)

    brdf = out[:3, :].T
    specular = out[3:, :].T
    return brdf, specular


def _reference(v, n, l, albedo, weights):
    """Pure-JAX transcription of the PyTorch forward (specular_rgb=True)."""
    lobe = jnp.asarray(_LOBE)
    h = l + v
    h = h / jnp.maximum(jnp.linalg.norm(h, axis=-1, keepdims=True), 1e-12)
    D = jnp.exp(lobe[None, :] * (jnp.sum(h * n, -1, keepdims=True) - 1.0))
    spec = jnp.clip(
        jnp.sum(weights.reshape(-1, 3, NBASIS) * D[:, None, :], axis=-1), 0.0, None)
    return albedo + spec, spec


if __name__ == "__main__":
    key = jax.random.PRNGKey(0)
    kv, kn, kl, ka, kw = jax.random.split(key, 5)

    N = 1003  # not a multiple of 128: exercises the ragged last lane-tile path

    def unit(k):
        x = jax.random.normal(k, (N, 3), dtype=jnp.float32)
        return x / jnp.linalg.norm(x, axis=-1, keepdims=True)

    v = unit(kv)
    n = unit(kn)
    l = unit(kl)
    albedo = jax.random.uniform(ka, (N, 3), dtype=jnp.float32)
    weights = jax.random.normal(kw, (N, 3 * NBASIS), dtype=jnp.float32) * 0.1

    brdf, specular = sg_basis_forward(v, n, l, albedo, weights)
    jax.block_until_ready((brdf, specular))

    brdf_ref, spec_ref = _reference(v, n, l, albedo, weights)
    assert brdf.shape == (N, 3) and specular.shape == (N, 3)
    # Tolerance: exp(lobe*(h.n-1)) with lobe up to e^10 ~ 2.2e4 amplifies ulp-level
    # f32 reordering differences in h.n by ~2e4, so a few 1e-3 absolute slack is
    # needed for near-aligned (h, n) rows; typical rows agree to ~1e-6.
    assert jnp.allclose(brdf, brdf_ref, atol=5e-3, rtol=1e-3), "brdf mismatch"
    assert jnp.allclose(specular, spec_ref, atol=5e-3, rtol=1e-3), "specular mismatch"

    print("KERNEL_OK")
</pallas_src>

<mosaic_0001>
module attributes {stable_mosaic.version = 11 : i64} {
  func.func @_sg_kernel(%arg0: i32, %arg1: memref<3x512xf32, #tpu.memory_space<vmem>>, %arg2: memref<3x512xf32, #tpu.memory_space<vmem>>, %arg3: memref<3x512xf32, #tpu.memory_space<vmem>>, %arg4: memref<3x512xf32, #tpu.memory_space<vmem>>, %arg5: memref<27x512xf32, #tpu.memory_space<vmem>>, %arg6: memref<6x512xf32, #tpu.memory_space<vmem>>) attributes {dimension_semantics = [#tpu.dimension_semantics<parallel>], iteration_bounds = array<i64: 2>, scalar_prefetch = 0 : i64, scratch_operands = 0 : i64, tpu.core_type = #tpu.core_type<tc>, window_params = [{transform_indices = @transform_0, window_bounds = array<i64: 3, 512>}, {transform_indices = @transform_1, window_bounds = array<i64: 3, 512>}, {transform_indices = @transform_2, window_bounds = array<i64: 3, 512>}, {transform_indices = @transform_3, window_bounds = array<i64: 3, 512>}, {transform_indices = @transform_4, window_bounds = array<i64: 27, 512>}, {transform_indices = @transform_5, window_bounds = array<i64: 6, 512>}]} {
    %c0 = arith.constant 0 : index
    %c0_0 = arith.constant 0 : index
    %0 = vector.load %arg1[%c0, %c0_0] : memref<3x512xf32, #tpu.memory_space<vmem>>, vector<1x512xf32>
    %c0_1 = arith.constant 0 : index
    %c0_2 = arith.constant 0 : index
    %1 = vector.load %arg3[%c0_1, %c0_2] : memref<3x512xf32, #tpu.memory_space<vmem>>, vector<1x512xf32>
    %2 = arith.addf %0, %1 : vector<1x512xf32>
    %c1 = arith.constant 1 : index
    %c0_3 = arith.constant 0 : index
    %3 = vector.load %arg1[%c1, %c0_3] : memref<3x512xf32, #tpu.memory_space<vmem>>, vector<1x512xf32>
    %c1_4 = arith.constant 1 : index
    %c0_5 = arith.constant 0 : index
    %4 = vector.load %arg3[%c1_4, %c0_5] : memref<3x512xf32, #tpu.memory_space<vmem>>, vector<1x512xf32>
    %5 = arith.addf %3, %4 : vector<1x512xf32>
    %c2 = arith.constant 2 : index
    %c0_6 = arith.constant 0 : index
    %6 = vector.load %arg1[%c2, %c0_6] : memref<3x512xf32, #tpu.memory_space<vmem>>, vector<1x512xf32>
    %c2_7 = arith.constant 2 : index
    %c0_8 = arith.constant 0 : index
    %7 = vector.load %arg3[%c2_7, %c0_8] : memref<3x512xf32, #tpu.memory_space<vmem>>, vector<1x512xf32>
    %8 = arith.addf %6, %7 : vector<1x512xf32>
    %c0_9 = arith.constant 0 : index
    %c0_10 = arith.constant 0 : index
    %9 = vector.load %arg2[%c0_9, %c0_10] : memref<3x512xf32, #tpu.memory_space<vmem>>, vector<1x512xf32>
    %c1_11 = arith.constant 1 : index
    %c0_12 = arith.constant 0 : index
    %10 = vector.load %arg2[%c1_11, %c0_12] : memref<3x512xf32, #tpu.memory_space<vmem>>, vector<1x512xf32>
    %c2_13 = arith.constant 2 : index
    %c0_14 = arith.constant 0 : index
    %11 = vector.load %arg2[%c2_13, %c0_14] : memref<3x512xf32, #tpu.memory_space<vmem>>, vector<1x512xf32>
    %12 = arith.mulf %2, %2 : vector<1x512xf32>
    %13 = arith.mulf %5, %5 : vector<1x512xf32>
    %14 = arith.addf %12, %13 : vector<1x512xf32>
    %15 = arith.mulf %8, %8 : vector<1x512xf32>
    %16 = arith.addf %14, %15 : vector<1x512xf32>
    %17 = arith.mulf %2, %9 : vector<1x512xf32>
    %18 = arith.mulf %5, %10 : vector<1x512xf32>
    %19 = arith.addf %17, %18 : vector<1x512xf32>
    %20 = arith.mulf %8, %11 : vector<1x512xf32>
    %21 = arith.addf %19, %20 : vector<1x512xf32>
    %cst = arith.constant 1.000000e-24 : f32
    %22 = vector.broadcast %cst : f32 to vector<1x512xf32>
    %23 = arith.maximumf %16, %22 : vector<1x512xf32>
    %24 = math.rsqrt %23 : vector<1x512xf32>
    %25 = arith.mulf %21, %24 : vector<1x512xf32>
    %cst_15 = arith.constant 1.000000e+00 : f32
    %26 = vector.broadcast %cst_15 : f32 to vector<1x512xf32>
    %27 = arith.subf %25, %26 : vector<1x512xf32>
    %cst_16 = arith.constant 7.3890562 : f32
    %28 = vector.broadcast %cst_16 : f32 to vector<1x512xf32>
    %29 = arith.mulf %28, %27 : vector<1x512xf32>
    %30 = math.exp %29 : vector<1x512xf32>
    %cst_17 = arith.constant 20.085537 : f32
    %31 = vector.broadcast %cst_17 : f32 to vector<1x512xf32>
    %32 = arith.mulf %31, %27 : vector<1x512xf32>
    %33 = math.exp %32 : vector<1x512xf32>
    %cst_18 = arith.constant 54.5981483 : f32
    %34 = vector.broadcast %cst_18 : f32 to vector<1x512xf32>
    %35 = arith.mulf %34, %27 : vector<1x512xf32>
    %36 = math.exp %35 : vector<1x512xf32>
    %cst_19 = arith.constant 148.413162 : f32
    %37 = vector.broadcast %cst_19 : f32 to vector<1x512xf32>
    %38 = arith.mulf %37, %27 : vector<1x512xf32>
    %39 = math.exp %38 : vector<1x512xf32>
    %cst_20 = arith.constant 403.428802 : f32
    %40 = vector.broadcast %cst_20 : f32 to vector<1x512xf32>
    %41 = arith.mulf %40, %27 : vector<1x512xf32>
    %42 = math.exp %41 : vector<1x512xf32>
    %cst_21 = arith.constant 1096.63318 : f32
    %43 = vector.broadcast %cst_21 : f32 to vector<1x512xf32>
    %44 = arith.mulf %43, %27 : vector<1x512xf32>
    %45 = math.exp %44 : vector<1x512xf32>
    %cst_22 = arith.constant 2980.95801 : f32
    %46 = vector.broadcast %cst_22 : f32 to vector<1x512xf32>
    %47 = arith.mulf %46, %27 : vector<1x512xf32>
    %48 = math.exp %47 : vector<1x512xf32>
    %cst_23 = arith.constant 8103.08398 : f32
    %49 = vector.broadcast %cst_23 : f32 to vector<1x512xf32>
    %50 = arith.mulf %49, %27 : vector<1x512xf32>
    %51 = math.exp %50 : vector<1x512xf32>
    %cst_24 = arith.constant 22026.4648 : f32
    %52 = vector.broadcast %cst_24 : f32 to vector<1x512xf32>
    %53 = arith.mulf %52, %27 : vector<1x512xf32>
    %54 = math.exp %53 : vector<1x512xf32>
    %c0_25 = arith.constant 0 : index
    %c0_26 = arith.constant 0 : index
    %55 = vector.load %arg5[%c0_25, %c0_26] : memref<27x512xf32, #tpu.memory_space<vmem>>, vector<1x512xf32>
    %56 = arith.mulf %55, %30 : vector<1x512xf32>
    %c1_27 = arith.constant 1 : index
    %c0_28 = arith.constant 0 : index
    %57 = vector.load %arg5[%c1_27, %c0_28] : memref<27x512xf32, #tpu.memory_space<vmem>>, vector<1x512xf32>
    %58 = arith.mulf %57, %33 : vector<1x512xf32>
    %59 = arith.addf %56, %58 : vector<1x512xf32>
    %c2_29 = arith.constant 2 : index
    %c0_30 = arith.constant 0 : index
    %60 = vector.load %arg5[%c2_29, %c0_30] : memref<27x512xf32, #tpu.memory_space<vmem>>, vector<1x512xf32>
    %61 = arith.mulf %60, %36 : vector<1x512xf32>
    %62 = arith.addf %59, %61 : vector<1x512xf32>
    %c3 = arith.constant 3 : index
    %c0_31 = arith.constant 0 : index
    %63 = vector.load %arg5[%c3, %c0_31] : memref<27x512xf32, #tpu.memory_space<vmem>>, vector<1x512xf32>
    %64 = arith.mulf %63, %39 : vector<1x512xf32>
    %65 = arith.addf %62, %64 : vector<1x512xf32>
    %c4 = arith.constant 4 : index
    %c0_32 = arith.constant 0 : index
    %66 = vector.load %arg5[%c4, %c0_32] : memref<27x512xf32, #tpu.memory_space<vmem>>, vector<1x512xf32>
    %67 = arith.mulf %66, %42 : vector<1x512xf32>
    %68 = arith.addf %65, %67 : vector<1x512xf32>
    %c5 = arith.constant 5 : index
    %c0_33 = arith.constant 0 : index
    %69 = vector.load %arg5[%c5, %c0_33] : memref<27x512xf32, #tpu.memory_space<vmem>>, vector<1x512xf32>
    %70 = arith.mulf %69, %45 : vector<1x512xf32>
    %71 = arith.addf %68, %70 : vector<1x512xf32>
    %c6 = arith.constant 6 : index
    %c0_34 = arith.constant 0 : index
    %72 = vector.load %arg5[%c6, %c0_34] : memref<27x512xf32, #tpu.memory_space<vmem>>, vector<1x512xf32>
    %73 = arith.mulf %72, %48 : vector<1x512xf32>
    %74 = arith.addf %71, %73 : vector<1x512xf32>
    %c7 = arith.constant 7 : index
    %c0_35 = arith.constant 0 : index
    %75 = vector.load %arg5[%c7, %c0_35] : memref<27x512xf32, #tpu.memory_space<vmem>>, vector<1x512xf32>
    %76 = arith.mulf %75, %51 : vector<1x512xf32>
    %77 = arith.addf %74, %76 : vector<1x512xf32>
    %c8 = arith.constant 8 : index
    %c0_36 = arith.constant 0 : index
    %78 = vector.load %arg5[%c8, %c0_36] : memref<27x512xf32, #tpu.memory_space<vmem>>, vector<1x512xf32>
    %79 = arith.mulf %78, %54 : vector<1x512xf32>
    %80 = arith.addf %77, %79 : vector<1x512xf32>
    %cst_37 = arith.constant 0.000000e+00 : f32
    %81 = vector.broadcast %cst_37 : f32 to vector<1x512xf32>
    %82 = arith.maximumf %80, %81 : vector<1x512xf32>
    %c3_38 = arith.constant 3 : index
    %c0_39 = arith.constant 0 : index
    %83 = vector.load %arg6[%c3_38, %c0_39] : memref<6x512xf32, #tpu.memory_space<vmem>>, vector<1x512xf32>
    tpu.vector_store %arg6[%c3_38, %c0_39], %82 {strides = array<i32>} : memref<6x512xf32, #tpu.memory_space<vmem>>, vector<1x512xf32>,
    %c0_40 = arith.constant 0 : index
    %c0_41 = arith.constant 0 : index
    %84 = vector.load %arg4[%c0_40, %c0_41] : memref<3x512xf32, #tpu.memory_space<vmem>>, vector<1x512xf32>
    %85 = arith.addf %84, %82 : vector<1x512xf32>
    %c0_42 = arith.constant 0 : index
    %c0_43 = arith.constant 0 : index
    %86 = vector.load %arg6[%c0_42, %c0_43] : memref<6x512xf32, #tpu.memory_space<vmem>>, vector<1x512xf32>
    tpu.vector_store %arg6[%c0_42, %c0_43], %85 {strides = array<i32>} : memref<6x512xf32, #tpu.memory_space<vmem>>, vector<1x512xf32>,
    %c9 = arith.constant 9 : index
    %c0_44 = arith.constant 0 : index
    %87 = vector.load %arg5[%c9, %c0_44] : memref<27x512xf32, #tpu.memory_space<vmem>>, vector<1x512xf32>
    %88 = arith.mulf %87, %30 : vector<1x512xf32>
    %c10 = arith.constant 10 : index
    %c0_45 = arith.constant 0 : index
    %89 = vector.load %arg5[%c10, %c0_45] : memref<27x512xf32, #tpu.memory_space<vmem>>, vector<1x512xf32>
    %90 = arith.mulf %89, %33 : vector<1x512xf32>
    %91 = arith.addf %88, %90 : vector<1x512xf32>
    %c11 = arith.constant 11 : index
    %c0_46 = arith.constant 0 : index
    %92 = vector.load %arg5[%c11, %c0_46] : memref<27x512xf32, #tpu.memory_space<vmem>>, vector<1x512xf32>
    %93 = arith.mulf %92, %36 : vector<1x512xf32>
    %94 = arith.addf %91, %93 : vector<1x512xf32>
    %c12 = arith.constant 12 : index
    %c0_47 = arith.constant 0 : index
    %95 = vector.load %arg5[%c12, %c0_47] : memref<27x512xf32, #tpu.memory_space<vmem>>, vector<1x512xf32>
    %96 = arith.mulf %95, %39 : vector<1x512xf32>
    %97 = arith.addf %94, %96 : vector<1x512xf32>
    %c13 = arith.constant 13 : index
    %c0_48 = arith.constant 0 : index
    %98 = vector.load %arg5[%c13, %c0_48] : memref<27x512xf32, #tpu.memory_space<vmem>>, vector<1x512xf32>
    %99 = arith.mulf %98, %42 : vector<1x512xf32>
    %100 = arith.addf %97, %99 : vector<1x512xf32>
    %c14 = arith.constant 14 : index
    %c0_49 = arith.constant 0 : index
    %101 = vector.load %arg5[%c14, %c0_49] : memref<27x512xf32, #tpu.memory_space<vmem>>, vector<1x512xf32>
    %102 = arith.mulf %101, %45 : vector<1x512xf32>
    %103 = arith.addf %100, %102 : vector<1x512xf32>
    %c15 = arith.constant 15 : index
    %c0_50 = arith.constant 0 : index
    %104 = vector.load %arg5[%c15, %c0_50] : memref<27x512xf32, #tpu.memory_space<vmem>>, vector<1x512xf32>
    %105 = arith.mulf %104, %48 : vector<1x512xf32>
    %106 = arith.addf %103, %105 : vector<1x512xf32>
    %c16 = arith.constant 16 : index
    %c0_51 = arith.constant 0 : index
    %107 = vector.load %arg5[%c16, %c0_51] : memref<27x512xf32, #tpu.memory_space<vmem>>, vector<1x512xf32>
    %108 = arith.mulf %107, %51 : vector<1x512xf32>
    %109 = arith.addf %106, %108 : vector<1x512xf32>
    %c17 = arith.constant 17 : index
    %c0_52 = arith.constant 0 : index
    %110 = vector.load %arg5[%c17, %c0_52] : memref<27x512xf32, #tpu.memory_space<vmem>>, vector<1x512xf32>
    %111 = arith.mulf %110, %54 : vector<1x512xf32>
    %112 = arith.addf %109, %111 : vector<1x512xf32>
    %cst_53 = arith.constant 0.000000e+00 : f32
    %113 = vector.broadcast %cst_53 : f32 to vector<1x512xf32>
    %114 = arith.maximumf %112, %113 : vector<1x512xf32>
    %c4_54 = arith.constant 4 : index
    %c0_55 = arith.constant 0 : index
    %115 = vector.load %arg6[%c4_54, %c0_55] : memref<6x512xf32, #tpu.memory_space<vmem>>, vector<1x512xf32>
    tpu.vector_store %arg6[%c4_54, %c0_55], %114 {strides = array<i32>} : memref<6x512xf32, #tpu.memory_space<vmem>>, vector<1x512xf32>,
    %c1_56 = arith.constant 1 : index
    %c0_57 = arith.constant 0 : index
    %116 = vector.load %arg4[%c1_56, %c0_57] : memref<3x512xf32, #tpu.memory_space<vmem>>, vector<1x512xf32>
    %117 = arith.addf %116, %114 : vector<1x512xf32>
    %c1_58 = arith.constant 1 : index
    %c0_59 = arith.constant 0 : index
    %118 = vector.load %arg6[%c1_58, %c0_59] : memref<6x512xf32, #tpu.memory_space<vmem>>, vector<1x512xf32>
    tpu.vector_store %arg6[%c1_58, %c0_59], %117 {strides = array<i32>} : memref<6x512xf32, #tpu.memory_space<vmem>>, vector<1x512xf32>,
    %c18 = arith.constant 18 : index
    %c0_60 = arith.constant 0 : index
    %119 = vector.load %arg5[%c18, %c0_60] : memref<27x512xf32, #tpu.memory_space<vmem>>, vector<1x512xf32>
    %120 = arith.mulf %119, %30 : vector<1x512xf32>
    %c19 = arith.constant 19 : index
    %c0_61 = arith.constant 0 : index
    %121 = vector.load %arg5[%c19, %c0_61] : memref<27x512xf32, #tpu.memory_space<vmem>>, vector<1x512xf32>
    %122 = arith.mulf %121, %33 : vector<1x512xf32>
    %123 = arith.addf %120, %122 : vector<1x512xf32>
    %c20 = arith.constant 20 : index
    %c0_62 = arith.constant 0 : index
    %124 = vector.load %arg5[%c20, %c0_62] : memref<27x512xf32, #tpu.memory_space<vmem>>, vector<1x512xf32>
    %125 = arith.mulf %124, %36 : vector<1x512xf32>
    %126 = arith.addf %123, %125 : vector<1x512xf32>
    %c21 = arith.constant 21 : index
    %c0_63 = arith.constant 0 : index
    %127 = vector.load %arg5[%c21, %c0_63] : memref<27x512xf32, #tpu.memory_space<vmem>>, vector<1x512xf32>
    %128 = arith.mulf %127, %39 : vector<1x512xf32>
    %129 = arith.addf %126, %128 : vector<1x512xf32>
    %c22 = arith.constant 22 : index
    %c0_64 = arith.constant 0 : index
    %130 = vector.load %arg5[%c22, %c0_64] : memref<27x512xf32, #tpu.memory_space<vmem>>, vector<1x512xf32>
    %131 = arith.mulf %130, %42 : vector<1x512xf32>
    %132 = arith.addf %129, %131 : vector<1x512xf32>
    %c23 = arith.constant 23 : index
    %c0_65 = arith.constant 0 : index
    %133 = vector.load %arg5[%c23, %c0_65] : memref<27x512xf32, #tpu.memory_space<vmem>>, vector<1x512xf32>
    %134 = arith.mulf %133, %45 : vector<1x512xf32>
    %135 = arith.addf %132, %134 : vector<1x512xf32>
    %c24 = arith.constant 24 : index
    %c0_66 = arith.constant 0 : index
    %136 = vector.load %arg5[%c24, %c0_66] : memref<27x512xf32, #tpu.memory_space<vmem>>, vector<1x512xf32>
    %137 = arith.mulf %136, %48 : vector<1x512xf32>
    %138 = arith.addf %135, %137 : vector<1x512xf32>
    %c25 = arith.constant 25 : index
    %c0_67 = arith.constant 0 : index
    %139 = vector.load %arg5[%c25, %c0_67] : memref<27x512xf32, #tpu.memory_space<vmem>>, vector<1x512xf32>
    %140 = arith.mulf %139, %51 : vector<1x512xf32>
    %141 = arith.addf %138, %140 : vector<1x512xf32>
    %c26 = arith.constant 26 : index
    %c0_68 = arith.constant 0 : index
    %142 = vector.load %arg5[%c26, %c0_68] : memref<27x512xf32, #tpu.memory_space<vmem>>, vector<1x512xf32>
    %143 = arith.mulf %142, %54 : vector<1x512xf32>
    %144 = arith.addf %141, %143 : vector<1x512xf32>
    %cst_69 = arith.constant 0.000000e+00 : f32
    %145 = vector.broadcast %cst_69 : f32 to vector<1x512xf32>
    %146 = arith.maximumf %144, %145 : vector<1x512xf32>
    %c5_70 = arith.constant 5 : index
    %c0_71 = arith.constant 0 : index
    %147 = vector.load %arg6[%c5_70, %c0_71] : memref<6x512xf32, #tpu.memory_space<vmem>>, vector<1x512xf32>
    tpu.vector_store %arg6[%c5_70, %c0_71], %146 {strides = array<i32>} : memref<6x512xf32, #tpu.memory_space<vmem>>, vector<1x512xf32>,
    %c2_72 = arith.constant 2 : index
    %c0_73 = arith.constant 0 : index
    %148 = vector.load %arg4[%c2_72, %c0_73] : memref<3x512xf32, #tpu.memory_space<vmem>>, vector<1x512xf32>
    %149 = arith.addf %148, %146 : vector<1x512xf32>
    %c2_74 = arith.constant 2 : index
    %c0_75 = arith.constant 0 : index
    %150 = vector.load %arg6[%c2_74, %c0_75] : memref<6x512xf32, #tpu.memory_space<vmem>>, vector<1x512xf32>
    tpu.vector_store %arg6[%c2_74, %c0_75], %149 {strides = array<i32>} : memref<6x512xf32, #tpu.memory_space<vmem>>, vector<1x512xf32>,
    return
  }
  func.func @transform_0(%arg0: i32) -> (i32, i32) {
    %c0_i32 = arith.constant 0 : i32
    %c0_i32_0 = arith.constant 0 : i32
    return %c0_i32, %arg0 : i32, i32
  }
  func.func @transform_1(%arg0: i32) -> (i32, i32) {
    %c0_i32 = arith.constant 0 : i32
    %c0_i32_0 = arith.constant 0 : i32
    return %c0_i32, %arg0 : i32, i32
  }
  func.func @transform_2(%arg0: i32) -> (i32, i32) {
    %c0_i32 = arith.constant 0 : i32
    %c0_i32_0 = arith.constant 0 : i32
    return %c0_i32, %arg0 : i32, i32
  }
  func.func @transform_3(%arg0: i32) -> (i32, i32) {
    %c0_i32 = arith.constant 0 : i32
    %c0_i32_0 = arith.constant 0 : i32
    return %c0_i32, %arg0 : i32, i32
  }
  func.func @transform_4(%arg0: i32) -> (i32, i32) {
    %c0_i32 = arith.constant 0 : i32
    %c0_i32_0 = arith.constant 0 : i32
    return %c0_i32, %arg0 : i32, i32
  }
  func.func @transform_5(%arg0: i32) -> (i32, i32) {
    %c0_i32 = arith.constant 0 : i32
    %c0_i32_0 = arith.constant 0 : i32
    return %c0_i32, %arg0 : i32, i32
  }
}

</mosaic_0001>

<llo_original>
// kernel: tpu_custom_call.1
$region0: #{tpu_custom_call.1}
  #allocation0 [shape = 'u32[]', space=smem, size = 0x4, offset = 0x4, fixed_abs, tag = 'smem constant byte address 0x4 - core index']
  #allocation1 [shape = 'u32[144,128]{1,0:T(1,128)}', space=vmem, size = 0x12000, scoped, tag = 'internal scratch']
  %s0 = inlined_call_operand.hbm [shape: f32[3,1003], index: 0, kind: input, shape index: {}]
  %s1 = inlined_call_operand.hbm [shape: f32[3,1003], index: 1, kind: input, shape index: {}]
  %s2 = inlined_call_operand.hbm [shape: f32[3,1003], index: 2, kind: input, shape index: {}]
  %s3 = inlined_call_operand.hbm [shape: f32[3,1003], index: 3, kind: input, shape index: {}]
  %s4 = inlined_call_operand.hbm [shape: f32[27,1003], index: 4, kind: input, shape index: {}]
  %s5 = inlined_call_operand.hbm [shape: f32[6,1003], index: 5, kind: output, shape index: {}]
  %s6 = sld [smem:[#allocation0]]
  $region73: #{tpu_custom_call.1} parent=0
    _
  %s8 = ssub.s32 1, %s6
  %s9 = scalar_select 0, %s8, %s6
  $region1: #{tpu_custom_call.1} parent=0
    #allocation2 [shape = 'u8[16384]{0}', space=vmem, size = 0x4000, scoped, tag = 'input window, operand 0']
    #allocation3 [shape = 's32[2]{0}', space=sflag, size = 0x8, scoped, tag = 'scoped memory for tpu_custom_call.1']
    #allocation4 [shape = 's32[2]{0}', space=sflag, size = 0x8, scoped, tag = 'scoped memory for tpu_custom_call.1']
    #allocation5 [shape = 'u8[16384]{0}', space=vmem, size = 0x4000, scoped, tag = 'input window, operand 1']
    #allocation6 [shape = 's32[2]{0}', space=sflag, size = 0x8, scoped, tag = 'scoped memory for tpu_custom_call.1']
    #allocation7 [shape = 'u8[16384]{0}', space=vmem, size = 0x4000, scoped, tag = 'input window, operand 2']
    #allocation8 [shape = 'u8[16384]{0}', space=vmem, size = 0x4000, scoped, tag = 'input window, operand 3']
    #allocation9 [shape = 's32[2]{0}', space=sflag, size = 0x8, scoped, tag = 'scoped memory for tpu_custom_call.1']
    #allocation10 [shape = 'u8[131072]{0}', space=vmem, size = 0x20000, scoped, tag = 'input window, operand 4']
    #allocation11 [shape = 'u8[32768]{0}', space=vmem, size = 0x8000, scoped, tag = 'output window, operand 0']
    %10 = vsyncpa [#allocation3], 0
    %s11 = scalar_lea.sflag [#allocation3], 1
    %12 = vsyncpa %s11, 0
    %13 = vsyncpa [#allocation6], 0
    %s14 = scalar_lea.sflag [#allocation6], 1
    %15 = vsyncpa %s14, 0
    %16 = vsyncpa [#allocation9], 0
    %s17 = scalar_lea.sflag [#allocation9], 1
    %18 = vsyncpa %s17, 0
    %19 = vsyncpa [#allocation4], 0
    %s20 = scalar_lea.sflag [#allocation4], 1
    %21 = vsyncpa %s20, 0
    loop: start=0, step=1, limit=4
    $region2: #{tpu_custom_call.1} parent=1 // loop_pre_header
      _
    $region3: #{tpu_custom_call.1} parent=1 // loop_header
      %s23 = sphi 0, %s27
      %p24 = scmp.ge.s32.totalorder %s23, 4
      %s33 = sphi 0, %s35
      %s36 = sphi 0, %s33
      %s37 = sphi 0, %s36
      %s53 = sphi 0, %s37
      %s59 = sphi 0, %s61
      %s62 = sphi 0, %s59
      %s63 = sphi 0, %s62
      %s79 = sphi 0, %s63
      %s85 = sphi 0, %s87
      %s88 = sphi 0, %s85
      %s89 = sphi 0, %s88
      %s105 = sphi 0, %s89
      %s111 = sphi 0, %s113
      %s114 = sphi 0, %s111
      %s115 = sphi 0, %s114
      %s131 = sphi 0, %s115
      %s137 = sphi 0, %s139
      %s140 = sphi 0, %s137
      %s141 = sphi 0, %s140
      %s157 = sphi 0, %s141
      %s163 = sphi 0, %s165
      %s166 = sphi 0, %s163
      %s167 = sphi 0, %s166
      %s183 = sphi 0, %s167
    $region4: #{tpu_custom_call.1} parent=1 // loop_header_branch
      %26 = sbr.rel (%p24) target = $region8
    $region5: #{tpu_custom_call.1} parent=1 // loop_body
      %s28 = ssub.s32 %s23, 1
      %s29 = ssub.s32 %s23, 2
      %s30 = sadd.s32 %s23, 1
      %s31 = ssub.s32 %s23, %s30
      %p32 = scmp.eq.s32.totalorder %s31, 0
      %s34 = sadd.s32 %s33, 1
      %s35 = scalar_select %p32, %s33, %s34
      %p38 = pneg %p32
      %p39 = scmp.eq.s32.totalorder %s23, 1
      %p40 = por %p38, %p39
      %p41 = scmp.ne.s32.totalorder %s33, %s36
      %p42 = scmp.eq.s32.totalorder %s23, 0
      %p43 = por %p41, %p42
      %p44 = scmp.ne.s32.totalorder %s33, %s36
      %p45 = scmp.eq.s32.totalorder %s28, 1
      %p46 = por %p44, %p45
      %p47 = scmp.ne.s32.totalorder %s36, %s37
      %p48 = scmp.eq.s32.totalorder %s28, 0
      %p49 = por %p47, %p48
      %p50 = scmp.ne.s32.totalorder %s36, %s37
      %p51 = scmp.eq.s32.totalorder %s29, 1
      %p52 = por %p50, %p51
      %p54 = scmp.ne.s32.totalorder %s37, %s53
      %p55 = scmp.eq.s32.totalorder %s29, 0
      %p56 = por %p54, %p55
      %s57 = ssub.s32 %s23, %s30
      %p58 = scmp.eq.s32.totalorder %s57, 0
      %s60 = sadd.s32 %s59, 1
      %s61 = scalar_select %p58, %s59, %s60
      %p64 = pneg %p58
      %p65 = scmp.eq.s32.totalorder %s23, 1
      %p66 = por %p64, %p65
      %p67 = scmp.ne.s32.totalorder %s59, %s62
      %p68 = scmp.eq.s32.totalorder %s23, 0
      %p69 = por %p67, %p68
      %p70 = scmp.ne.s32.totalorder %s59, %s62
      %p71 = scmp.eq.s32.totalorder %s28, 1
      %p72 = por %p70, %p71
      %p73 = scmp.ne.s32.totalorder %s62, %s63
      %p74 = scmp.eq.s32.totalorder %s28, 0
      %p75 = por %p73, %p74
      %p76 = scmp.ne.s32.totalorder %s62, %s63
      %p77 = scmp.eq.s32.totalorder %s29, 1
      %p78 = por %p76, %p77
      %p80 = scmp.ne.s32.totalorder %s63, %s79
      %p81 = scmp.eq.s32.totalorder %s29, 0
      %p82 = por %p80, %p81
      %s83 = ssub.s32 %s23, %s30
      %p84 = scmp.eq.s32.totalorder %s83, 0
      %s86 = sadd.s32 %s85, 1
      %s87 = scalar_select %p84, %s85, %s86
      %p90 = pneg %p84
      %p91 = scmp.eq.s32.totalorder %s23, 1
      %p92 = por %p90, %p91
      %p93 = scmp.ne.s32.totalorder %s85, %s88
      %p94 = scmp.eq.s32.totalorder %s23, 0
      %p95 = por %p93, %p94
      %p96 = scmp.ne.s32.totalorder %s85, %s88
      %p97 = scmp.eq.s32.totalorder %s28, 1
      %p98 = por %p96, %p97
      %p99 = scmp.ne.s32.totalorder %s88, %s89
      %p100 = scmp.eq.s32.totalorder %s28, 0
      %p101 = por %p99, %p100
      %p102 = scmp.ne.s32.totalorder %s88, %s89
      %p103 = scmp.eq.s32.totalorder %s29, 1
      %p104 = por %p102, %p103
      %p106 = scmp.ne.s32.totalorder %s89, %s105
      %p107 = scmp.eq.s32.totalorder %s29, 0
      %p108 = por %p106, %p107
      %s109 = ssub.s32 %s23, %s30
      %p110 = scmp.eq.s32.totalorder %s109, 0
      %s112 = sadd.s32 %s111, 1
      %s113 = scalar_select %p110, %s111, %s112
      %p116 = pneg %p110
      %p117 = scmp.eq.s32.totalorder %s23, 1
      %p118 = por %p116, %p117
      %p119 = scmp.ne.s32.totalorder %s111, %s114
      %p120 = scmp.eq.s32.totalorder %s23, 0
      %p121 = por %p119, %p120
      %p122 = scmp.ne.s32.totalorder %s111, %s114
      %p123 = scmp.eq.s32.totalorder %s28, 1
      %p124 = por %p122, %p123
      %p125 = scmp.ne.s32.totalorder %s114, %s115
      %p126 = scmp.eq.s32.totalorder %s28, 0
      %p127 = por %p125, %p126
      %p128 = scmp.ne.s32.totalorder %s114, %s115
      %p129 = scmp.eq.s32.totalorder %s29, 1
      %p130 = por %p128, %p129
      %p132 = scmp.ne.s32.totalorder %s115, %s131
      %p133 = scmp.eq.s32.totalorder %s29, 0
      %p134 = por %p132, %p133
      %s135 = ssub.s32 %s23, %s30
      %p136 = scmp.eq.s32.totalorder %s135, 0
      %s138 = sadd.s32 %s137, 1
      %s139 = scalar_select %p136, %s137, %s138
      %p142 = pneg %p136
      %p143 = scmp.eq.s32.totalorder %s23, 1
      %p144 = por %p142, %p143
      %p145 = scmp.ne.s32.totalorder %s137, %s140
      %p146 = scmp.eq.s32.totalorder %s23, 0
      %p147 = por %p145, %p146
      %p148 = scmp.ne.s32.totalorder %s137, %s140
      %p149 = scmp.eq.s32.totalorder %s28, 1
      %p150 = por %p148, %p149
      %p151 = scmp.ne.s32.totalorder %s140, %s141
      %p152 = scmp.eq.s32.totalorder %s28, 0
      %p153 = por %p151, %p152
      %p154 = scmp.ne.s32.totalorder %s140, %s141
      %p155 = scmp.eq.s32.totalorder %s29, 1
      %p156 = por %p154, %p155
      %p158 = scmp.ne.s32.totalorder %s141, %s157
      %p159 = scmp.eq.s32.totalorder %s29, 0
      %p160 = por %p158, %p159
      %s161 = ssub.s32 %s23, %s30
      %p162 = scmp.eq.s32.totalorder %s161, 0
      %s164 = sadd.s32 %s163, 1
      %s165 = scalar_select %p162, %s163, %s164
      %p168 = pneg %p162
      %p169 = scmp.eq.s32.totalorder %s23, 1
      %p170 = por %p168, %p169
      %p171 = scmp.ne.s32.totalorder %s163, %s166
      %p172 = scmp.eq.s32.totalorder %s23, 0
      %p173 = por %p171, %p172
      %p174 = scmp.ne.s32.totalorder %s163, %s166
      %p175 = scmp.eq.s32.totalorder %s28, 1
      %p176 = por %p174, %p175
      %p177 = scmp.ne.s32.totalorder %s166, %s167
      %p178 = scmp.eq.s32.totalorder %s28, 0
      %p179 = por %p177, %p178
      %p180 = scmp.ne.s32.totalorder %s166, %s167
      %p181 = scmp.eq.s32.totalorder %s29, 1
      %p182 = por %p180, %p181
      %p184 = scmp.ne.s32.totalorder %s167, %s183
      %p185 = scmp.eq.s32.totalorder %s29, 0
      %p186 = por %p184, %p185
      %p187 = scmp.le.s32.totalorder 1, %s23
      %p188 = scmp.lt.s32.totalorder %s23, 3
      %p189 = pnand %p187, %p188
      %p190 = pneg %p189
      // Predicated region
      $region9: #{tpu_custom_call.1} parent=5 // pred_check
        _
      $region10: #{tpu_custom_call.1} parent=5 // pred_check_branch
        %192 = sbr.rel (%p189) target = $region12
      $region11: #{tpu_custom_call.1} parent=5 // pred_region
        %s193 = ssub.s32 %s23, 1
      $region12: #{tpu_custom_call.1} parent=5 // pred_fallthru
        _
      %p194 = scmp.lt.s32.totalorder %s23, 2
      // Predicated region
      $region13: #{tpu_custom_call.1} parent=5 // pred_check
        %p195 = pneg %p194
      $region14: #{tpu_custom_call.1} parent=5 // pred_check_branch
        %197 = sbr.rel (%p195) target = $region16
      $region15: #{tpu_custom_call.1} parent=5 // pred_region
        // Predicated region
        $region17: #{tpu_custom_call.1} parent=15 // pred_check
          %p198 = pneg %p43
        $region18: #{tpu_custom_call.1} parent=15 // pred_check_branch
          %200 = sbr.rel (%p198) target = $region20
        $region19: #{tpu_custom_call.1} parent=15 // pred_region
          %s201 = sand.u32 %s33, 1
          %s202 = scalar_lea.sflag [#allocation3], %s201
          %s203 = sand.u32 %s33, 1
          %s204 = smul.addr %s203, 16
          %s205 = scalar_lea.vmem [#allocation2], %s204
          %s206 = smul.u32 4, %s23
          %s208 = ssub.s32 256, 256
          %209 = vsyncadd %s202, %s208
          %s210 = smul.addr %s206, 64
          %s211 = scalar_lea.hbm %s0, %s210
          %s213 = sshll.u32 %s205, 4
          %s214 = int_to_ptr.vmem [resolvable:$true] %s213
          %216 = dma.hbm_to_vmem [thread:$0]  %s211, 256, %s214, %s202
        $region20: #{tpu_custom_call.1} parent=15 // pred_fallthru
          _
        // Predicated region
        $region21: #{tpu_custom_call.1} parent=15 // pred_check
          %p217 = pneg %p69
        $region22: #{tpu_custom_call.1} parent=15 // pred_check_branch
          %219 = sbr.rel (%p217) target = $region24
        $region23: #{tpu_custom_call.1} parent=15 // pred_region
          %s220 = sand.u32 %s23, 1
          %s221 = scalar_lea.sflag [#allocation6], %s220
          %s222 = sand.u32 %s59, 1
          %s223 = smul.addr %s222, 16
          %s224 = scalar_lea.vmem [#allocation5], %s223
          %s225 = smul.u32 4, %s23
          %s227 = ssub.s32 256, 256
          %228 = vsyncadd %s221, %s227
          %s229 = smul.addr %s225, 64
          %s230 = scalar_lea.hbm %s1, %s229
          %s232 = sshll.u32 %s224, 4
          %s233 = int_to_ptr.vmem [resolvable:$true] %s232
          %235 = dma.hbm_to_vmem [thread:$0]  %s230, 256, %s233, %s221
        $region24: #{tpu_custom_call.1} parent=15 // pred_fallthru
          _
        // Predicated region
        $region25: #{tpu_custom_call.1} parent=15 // pred_check
          %p236 = pneg %p95
        $region26: #{tpu_custom_call.1} parent=15 // pred_check_branch
          %238 = sbr.rel (%p236) target = $region28
        $region27: #{tpu_custom_call.1} parent=15 // pred_region
          %s239 = sand.u32 %s23, 1
          %s240 = scalar_lea.sflag [#allocation6], %s239
          %s241 = sand.u32 %s85, 1
          %s242 = smul.addr %s241, 16
          %s243 = scalar_lea.vmem [#allocation7], %s242
          %s244 = smul.u32 4, %s23
          %s246 = ssub.s32 256, 256
          %247 = vsyncadd %s240, %s246
          %s248 = smul.addr %s244, 64
          %s249 = scalar_lea.hbm %s2, %s248
          %s251 = sshll.u32 %s243, 4
          %s252 = int_to_ptr.vmem [resolvable:$true] %s251
          %254 = dma.hbm_to_vmem [thread:$0]  %s249, 256, %s252, %s240
        $region28: #{tpu_custom_call.1} parent=15 // pred_fallthru
          _
        // Predicated region
        $region29: #{tpu_custom_call.1} parent=15 // pred_check
          %p255 = pneg %p121
        $region30: #{tpu_custom_call.1} parent=15 // pred_check_branch
          %257 = sbr.rel (%p255) target = $region32
        $region31: #{tpu_custom_call.1} parent=15 // pred_region
          %s258 = sand.u32 %s23, 1
          %s259 = scalar_lea.sflag [#allocation9], %s258
          %s260 = sand.u32 %s111, 1
          %s261 = smul.addr %s260, 16
          %s262 = scalar_lea.vmem [#allocation8], %s261
          %s263 = smul.u32 4, %s23
          %s265 = ssub.s32 256, 256
          %266 = vsyncadd %s259, %s265
          %s267 = smul.addr %s263, 64
          %s268 = scalar_lea.hbm %s3, %s267
          %s270 = sshll.u32 %s262, 4
          %s271 = int_to_ptr.vmem [resolvable:$true] %s270
          %273 = dma.hbm_to_vmem [thread:$0]  %s268, 256, %s271, %s259
        $region32: #{tpu_custom_call.1} parent=15 // pred_fallthru
          _
        // Predicated region
        $region33: #{tpu_custom_call.1} parent=15 // pred_check
          %p274 = pneg %p147
        $region34: #{tpu_custom_call.1} parent=15 // pred_check_branch
          %276 = sbr.rel (%p274) target = $region36
        $region35: #{tpu_custom_call.1} parent=15 // pred_region
          %s277 = sand.u32 %s23, 1
          %s278 = scalar_lea.sflag [#allocation9], %s277
          %s279 = sand.u32 %s137, 1
          %s280 = smul.addr %s279, 128
          %s281 = scalar_lea.vmem [#allocation10], %s280
          %s282 = smul.u32 4, %s23
          %s284 = ssub.s32 2048, 2048
          %285 = vsyncadd %s278, %s284
          %s286 = smul.addr %s282, 128
          %s287 = scalar_lea.hbm %s4, %s286
          %s288 = sshll.u32 %s281, 4
          %s289 = int_to_ptr.vmem [resolvable:$true] %s288
          %294 = dma.hbm_to_vmem [thread:$0]  %s287, 2048, %s289, %s278, 1024, 512, 32
        $region36: #{tpu_custom_call.1} parent=15 // pred_fallthru
          _
      $region16: #{tpu_custom_call.1} parent=5 // pred_fallthru
        _
      %p295 = scmp.le.s32.totalorder 1, %s23
      %p296 = scmp.lt.s32.totalorder %s23, 3
      %p297 = pnand %p295, %p296
      %p298 = pneg %p297
      // Predicated region
      $region37: #{tpu_custom_call.1} parent=5 // pred_check
        _
      $region38: #{tpu_custom_call.1} parent=5 // pred_check_branch
        %300 = sbr.rel (%p297) target = $region40
      $region39: #{tpu_custom_call.1} parent=5 // pred_region
        %s301 = ssub.s32 %s23, 1
        %s302 = sand.u32 %s36, 1
        %s303 = scalar_lea.sflag [#allocation3], %s302
        %s304 = sand.u32 %s36, 1
        %s305 = smul.addr %s304, 16
        %s306 = scalar_lea.vmem [#allocation2], %s305
        // Predicated region
        $region41: #{tpu_custom_call.1} parent=39 // pred_check
          %p307 = pneg %p49
        $region42: #{tpu_custom_call.1} parent=39 // pred_check_branch
          %309 = sbr.rel (%p307) target = $region44
        $region43: #{tpu_custom_call.1} parent=39 // pred_region
          %310 = dma.done %s303, 256
        $region44: #{tpu_custom_call.1} parent=39 // pred_fallthru
          _
        %s311 = sand.u32 %s28, 1
        %s312 = scalar_lea.sflag [#allocation6], %s311
        %s313 = sand.u32 %s62, 1
        %s314 = smul.addr %s313, 16
        %s315 = scalar_lea.vmem [#allocation5], %s314
        // Predicated region
        $region45: #{tpu_custom_call.1} parent=39 // pred_check
          %p316 = pneg %p75
        $region46: #{tpu_custom_call.1} parent=39 // pred_check_branch
          %318 = sbr.rel (%p316) target = $region48
        $region47: #{tpu_custom_call.1} parent=39 // pred_region
          %319 = dma.done %s312, 256
        $region48: #{tpu_custom_call.1} parent=39 // pred_fallthru
          _
        %s320 = sand.u32 %s28, 1
        %s321 = scalar_lea.sflag [#allocation6], %s320
        %s322 = sand.u32 %s88, 1
        %s323 = smul.addr %s322, 16
        %s324 = scalar_lea.vmem [#allocation7], %s323
        // Predicated region
        $region49: #{tpu_custom_call.1} parent=39 // pred_check
          %p325 = pneg %p101
        $region50: #{tpu_custom_call.1} parent=39 // pred_check_branch
          %327 = sbr.rel (%p325) target = $region52
        $region51: #{tpu_custom_call.1} parent=39 // pred_region
          %328 = dma.done %s321, 256
        $region52: #{tpu_custom_call.1} parent=39 // pred_fallthru
          _
        %s329 = sand.u32 %s28, 1
        %s330 = scalar_lea.sflag [#allocation9], %s329
        %s331 = sand.u32 %s114, 1
        %s332 = smul.addr %s331, 16
        %s333 = scalar_lea.vmem [#allocation8], %s332
        // Predicated region
        $region53: #{tpu_custom_call.1} parent=39 // pred_check
          %p334 = pneg %p127
        $region54: #{tpu_custom_call.1} parent=39 // pred_check_branch
          %336 = sbr.rel (%p334) target = $region56
        $region55: #{tpu_custom_call.1} parent=39 // pred_region
          %337 = dma.done %s330, 256
        $region56: #{tpu_custom_call.1} parent=39 // pred_fallthru
          _
        %s338 = sand.u32 %s28, 1
        %s339 = scalar_lea.sflag [#allocation9], %s338
        %s340 = sand.u32 %s140, 1
        %s341 = smul.addr %s340, 128
        %s342 = scalar_lea.vmem [#allocation10], %s341
        // Predicated region
        $region57: #{tpu_custom_call.1} parent=39 // pred_check
          %p343 = pneg %p153
        $region58: #{tpu_custom_call.1} parent=39 // pred_check_branch
          %345 = sbr.rel (%p343) target = $region60
        $region59: #{tpu_custom_call.1} parent=39 // pred_region
          %346 = dma.done %s339, 2048
        $region60: #{tpu_custom_call.1} parent=39 // pred_fallthru
          _
        %s347 = sand.u32 %s36, 1
        %s348 = scalar_lea.sflag [#allocation3], %s347
        %s349 = sand.u32 %s36, 1
        %s350 = smul.addr %s349, 16
        %s351 = scalar_lea.vmem [#allocation2], %s350
        %p352 = pneg %p49
        %p353 = pneg %p46
        %s354 = sand.u32 %s28, 1
        %s355 = scalar_lea.sflag [#allocation6], %s354
        %s356 = sand.u32 %s62, 1
        %s357 = smul.addr %s356, 16
        %s358 = scalar_lea.vmem [#allocation5], %s357
        %p359 = pneg %p75
        %p360 = pneg %p72
        %s361 = sand.u32 %s28, 1
        %s362 = scalar_lea.sflag [#allocation6], %s361
        %s363 = sand.u32 %s88, 1
        %s364 = smul.addr %s363, 16
        %s365 = scalar_lea.vmem [#allocation7], %s364
        %p366 = pneg %p101
        %p367 = pneg %p98
        %s368 = sand.u32 %s28, 1
        %s369 = scalar_lea.sflag [#allocation9], %s368
        %s370 = sand.u32 %s114, 1
        %s371 = smul.addr %s370, 16
        %s372 = scalar_lea.vmem [#allocation8], %s371
        %p373 = pneg %p127
        %p374 = pneg %p124
        %s375 = sand.u32 %s28, 1
        %s376 = scalar_lea.sflag [#allocation9], %s375
        %s377 = sand.u32 %s140, 1
        %s378 = smul.addr %s377, 128
        %s379 = scalar_lea.vmem [#allocation10], %s378
        %p380 = pneg %p153
        %p381 = pneg %p150
        %p382 = pneg %p179
        %p383 = pneg %p176
        %s384 = sand.u32 %s166, 1
        %s385 = scalar_lea.sflag [#allocation4], %s384
        %s386 = sand.u32 %s166, 1
        %s387 = smul.addr %s386, 32
        %s388 = scalar_lea.vmem [#allocation11], %s387
        %s389 = smul.u32 4, %s28
        %s390 = smul.u32 4, %s28
        %s391 = smul.u32 4, %s28
        %s392 = smul.u32 4, %s28
        %s393 = smul.u32 4, %s28
        %s394 = smul.u32 4, %s28
        %v395 = vld [vmem:[%s306] ss:$4 sm:$0xf]
        %v396 = vld [vmem:[%s324] ss:$4 sm:$0xf]
        %v397 = vadd.f32 %v395, %v396
        %s398 = scalar_lea.vmem %s306, 1 [#allocation2]
        %v399 = vld [vmem:[%s398] ss:$4 sm:$0xf]
        %s400 = scalar_lea.vmem %s324, 1 [#allocation7]
        %v401 = vld [vmem:[%s400] ss:$4 sm:$0xf]
        %v402 = vadd.f32 %v399, %v401
        %s403 = scalar_lea.vmem %s306, 2 [#allocation2]
        %v404 = vld [vmem:[%s403] ss:$4 sm:$0xf]
        %s405 = scalar_lea.vmem %s324, 2 [#allocation7]
        %v406 = vld [vmem:[%s405] ss:$4 sm:$0xf]
        %v407 = vadd.f32 %v404, %v406
        %v408 = vld [vmem:[%s315] ss:$4 sm:$0xf]
        %s409 = scalar_lea.vmem %s315, 1 [#allocation5]
        %v410 = vld [vmem:[%s409] ss:$4 sm:$0xf]
        %s411 = scalar_lea.vmem %s315, 2 [#allocation5]
        %v412 = vld [vmem:[%s411] ss:$4 sm:$0xf]
        %v413 = vmul.f32 %v397, %v397
        %v414 = vmul.f32 %v402, %v402
        %v415 = vadd.f32 %v413, %v414
        %v416 = vmul.f32 %v407, %v407
        %v417 = vadd.f32 %v415, %v416
        %v418 = vmul.f32 %v397, %v408
        %v419 = vmul.f32 %v402, %v410
        %v420 = vadd.f32 %v418, %v419
        %v421 = vmul.f32 %v407, %v412
        %v422 = vadd.f32 %v420, %v421
        %v423 = vmax.f32 %v417, 1e-24
        %v424 = vrsqrt.pop %v423
        %v425 = vmul.f32 %v422, %v424
        %v426 = vsub.f32 %v425, 1.0
        %v427 = vmul.f32 %v426, 7.389056
        %v428 = vmul.f32 %v427, 1.442695
        %v429 = vpow.pop %v428
        %v430 = vmul.f32 %v426, 20.085537
        %v431 = vmul.f32 %v430, 1.442695
        %v432 = vpow.pop %v431
        %v433 = vmul.f32 %v426, 54.59815
        %v434 = vmul.f32 %v433, 1.442695
        %v435 = vpow.pop %v434
        %v436 = vmul.f32 %v426, 148.41316
        %v437 = vmul.f32 %v436, 1.442695
        %v438 = vpow.pop %v437
        %v439 = vmul.f32 %v426, 403.4288
        %v440 = vmul.f32 %v439, 1.442695
        %v441 = vpow.pop %v440
        %v442 = vmul.f32 %v426, 1096.6332
        %v443 = vmul.f32 %v442, 1.442695
        %v444 = vpow.pop %v443
        %v445 = vmul.f32 %v426, 2980.958
        %v446 = vmul.f32 %v445, 1.442695
        %v447 = vpow.pop %v446
        %v448 = vmul.f32 %v426, 8103.084
        %v449 = vmul.f32 %v448, 1.442695
        %v450 = vpow.pop %v449
        %v451 = vmul.f32 %v426, 22026.465
        %v452 = vmul.f32 %v451, 1.442695
        %v453 = vpow.pop %v452
        %v454 = vld [vmem:[%s342] ss:$8 sm:$0xf]
        %v455 = vmul.f32 %v454, %v429
        %s456 = scalar_lea.vmem %s342, 1 [#allocation10]
        %v457 = vld [vmem:[%s456] ss:$8 sm:$0xf]
        %v458 = vmul.f32 %v457, %v432
        %v459 = vadd.f32 %v455, %v458
        %s460 = scalar_lea.vmem %s342, 2 [#allocation10]
        %v461 = vld [vmem:[%s460] ss:$8 sm:$0xf]
        %v462 = vmul.f32 %v461, %v435
        %v463 = vadd.f32 %v459, %v462
        %s464 = scalar_lea.vmem %s342, 3 [#allocation10]
        %v465 = vld [vmem:[%s464] ss:$8 sm:$0xf]
        %v466 = vmul.f32 %v465, %v438
        %v467 = vadd.f32 %v463, %v466
        %s468 = scalar_lea.vmem %s342, 4 [#allocation10]
        %v469 = vld [vmem:[%s468] ss:$8 sm:$0xf]
        %v470 = vmul.f32 %v469, %v441
        %v471 = vadd.f32 %v467, %v470
        %s472 = scalar_lea.vmem %s342, 5 [#allocation10]
        %v473 = vld [vmem:[%s472] ss:$8 sm:$0xf]
        %v474 = vmul.f32 %v473, %v444
        %v475 = vadd.f32 %v471, %v474
        %s476 = scalar_lea.vmem %s342, 6 [#allocation10]
        %v477 = vld [vmem:[%s476] ss:$8 sm:$0xf]
        %v478 = vmul.f32 %v477, %v447
        %v479 = vadd.f32 %v475, %v478
        %s480 = scalar_lea.vmem %s342, 7 [#allocation10]
        %v481 = vld [vmem:[%s480] ss:$8 sm:$0xf]
        %v482 = vmul.f32 %v481, %v450
        %v483 = vadd.f32 %v479, %v482
        %s484 = scalar_lea.vmem %s342, 32 [#allocation10]
        %v485 = vld [vmem:[%s484] ss:$8 sm:$0xf]
        %v486 = vmul.f32 %v485, %v453
        %v487 = vadd.f32 %v483, %v486
        %v488 = vmax.f32 %v487, 0.0
        %v489 = vlaneseq
        %vm490 = vcmp.ge.s32.totalorder %v489, 0
        %vm491 = vcmp.lt.s32.totalorder %v489, 512
        %vm492 = vmand %vm490, %vm491
        %s493 = scalar_lea.vmem %s388, 3 [#allocation11]
        %494 = vst.msk [vmem:[%s493] ss:$8 sm:$0xf] %vm492, %v488
        %495 = vst.msk [vmem:[%s493] ss:$8 sm:$0x0] %vm492, %v488
        %v496 = vld [vmem:[%s333] ss:$4 sm:$0xf]
        %v497 = vadd.f32 %v496, %v488
        %498 = vst.msk [vmem:[%s388] ss:$8 sm:$0xf] %vm492, %v497
        %499 = vst.msk [vmem:[%s388] ss:$8 sm:$0x0] %vm492, %v497
        %s500 = scalar_lea.vmem %s342, 33 [#allocation10]
        %v501 = vld [vmem:[%s500] ss:$8 sm:$0xf]
        %v502 = vmul.f32 %v501, %v429
        %s503 = scalar_lea.vmem %s342, 34 [#allocation10]
        %v504 = vld [vmem:[%s503] ss:$8 sm:$0xf]
        %v505 = vmul.f32 %v504, %v432
        %v506 = vadd.f32 %v502, %v505
        %s507 = scalar_lea.vmem %s342, 35 [#allocation10]
        %v508 = vld [vmem:[%s507] ss:$8 sm:$0xf]
        %v509 = vmul.f32 %v508, %v435
        %v510 = vadd.f32 %v506, %v509
        %s511 = scalar_lea.vmem %s342, 36 [#allocation10]
        %v512 = vld [vmem:[%s511] ss:$8 sm:$0xf]
        %v513 = vmul.f32 %v512, %v438
        %v514 = vadd.f32 %v510, %v513
        %s515 = scalar_lea.vmem %s342, 37 [#allocation10]
        %v516 = vld [vmem:[%s515] ss:$8 sm:$0xf]
        %v517 = vmul.f32 %v516, %v441
        %v518 = vadd.f32 %v514, %v517
        %s519 = scalar_lea.vmem %s342, 38 [#allocation10]
        %v520 = vld [vmem:[%s519] ss:$8 sm:$0xf]
        %v521 = vmul.f32 %v520, %v444
        %v522 = vadd.f32 %v518, %v521
        %s523 = scalar_lea.vmem %s342, 39 [#allocation10]
        %v524 = vld [vmem:[%s523] ss:$8 sm:$0xf]
        %v525 = vmul.f32 %v524, %v447
        %v526 = vadd.f32 %v522, %v525
        %s527 = scalar_lea.vmem %s342, 64 [#allocation10]
        %v528 = vld [vmem:[%s527] ss:$8 sm:$0xf]
        %v529 = vmul.f32 %v528, %v450
        %v530 = vadd.f32 %v526, %v529
        %s531 = scalar_lea.vmem %s342, 65 [#allocation10]
        %v532 = vld [vmem:[%s531] ss:$8 sm:$0xf]
        %v533 = vmul.f32 %v532, %v453
        %v534 = vadd.f32 %v530, %v533
        %v535 = vmax.f32 %v534, 0.0
        %s536 = scalar_lea.vmem %s388, 4 [#allocation11]
        %537 = vst.msk [vmem:[%s536] ss:$8 sm:$0xf] %vm492, %v535
        %538 = vst.msk [vmem:[%s536] ss:$8 sm:$0x0] %vm492, %v535
        %s539 = scalar_lea.vmem %s333, 1 [#allocation8]
        %v540 = vld [vmem:[%s539] ss:$4 sm:$0xf]
        %v541 = vadd.f32 %v540, %v535
        %s542 = scalar_lea.vmem %s388, 1 [#allocation11]
        %543 = vst.msk [vmem:[%s542] ss:$8 sm:$0xf] %vm492, %v541
        %544 = vst.msk [vmem:[%s542] ss:$8 sm:$0x0] %vm492, %v541
        %s545 = scalar_lea.vmem %s342, 66 [#allocation10]
        %v546 = vld [vmem:[%s545] ss:$8 sm:$0xf]
        %v547 = vmul.f32 %v546, %v429
        %s548 = scalar_lea.vmem %s342, 67 [#allocation10]
        %v549 = vld [vmem:[%s548] ss:$8 sm:$0xf]
        %v550 = vmul.f32 %v549, %v432
        %v551 = vadd.f32 %v547, %v550
        %s552 = scalar_lea.vmem %s342, 68 [#allocation10]
        %v553 = vld [vmem:[%s552] ss:$8 sm:$0xf]
        %v554 = vmul.f32 %v553, %v435
        %v555 = vadd.f32 %v551, %v554
        %s556 = scalar_lea.vmem %s342, 69 [#allocation10]
        %v557 = vld [vmem:[%s556] ss:$8 sm:$0xf]
        %v558 = vmul.f32 %v557, %v438
        %v559 = vadd.f32 %v555, %v558
        %s560 = scalar_lea.vmem %s342, 70 [#allocation10]
        %v561 = vld [vmem:[%s560] ss:$8 sm:$0xf]
        %v562 = vmul.f32 %v561, %v441
        %v563 = vadd.f32 %v559, %v562
        %s564 = scalar_lea.vmem %s342, 71 [#allocation10]
        %v565 = vld [vmem:[%s564] ss:$8 sm:$0xf]
        %v566 = vmul.f32 %v565, %v444
        %v567 = vadd.f32 %v563, %v566
        %s568 = scalar_lea.vmem %s342, 96 [#allocation10]
        %v569 = vld [vmem:[%s568] ss:$8 sm:$0xf]
        %v570 = vmul.f32 %v569, %v447
        %v571 = vadd.f32 %v567, %v570
        %s572 = scalar_lea.vmem %s342, 97 [#allocation10]
        %v573 = vld [vmem:[%s572] ss:$8 sm:$0xf]
        %v574 = vmul.f32 %v573, %v450
        %v575 = vadd.f32 %v571, %v574
        %s576 = scalar_lea.vmem %s342, 98 [#allocation10]
        %v577 = vld [vmem:[%s576] ss:$8 sm:$0xf]
        %v578 = vmul.f32 %v577, %v453
        %v579 = vadd.f32 %v575, %v578
        %v580 = vmax.f32 %v579, 0.0
        %s581 = scalar_lea.vmem %s388, 5 [#allocation11]
        %582 = vst.msk [vmem:[%s581] ss:$8 sm:$0xf] %vm492, %v580
        %583 = vst.msk [vmem:[%s581] ss:$8 sm:$0x0] %vm492, %v580
        %s584 = scalar_lea.vmem %s333, 2 [#allocation8]
        %v585 = vld [vmem:[%s584] ss:$4 sm:$0xf]
        %v586 = vadd.f32 %v585, %v580
        %s587 = scalar_lea.vmem %s388, 2 [#allocation11]
        %588 = vst.msk [vmem:[%s587] ss:$8 sm:$0xf] %vm492, %v586
        %589 = vst.msk [vmem:[%s587] ss:$8 sm:$0x0] %vm492, %v586
        %s590 = sand.u32 %s166, 1
        %s591 = scalar_lea.sflag [#allocation4], %s590
        %s592 = sand.u32 %s166, 1
        %s593 = smul.addr %s592, 32
        %s594 = scalar_lea.vmem [#allocation11], %s593
        // Predicated region
        $region61: #{tpu_custom_call.1} parent=39 // pred_check
          %p595 = pneg %p176
        $region62: #{tpu_custom_call.1} parent=39 // pred_check_branch
          %597 = sbr.rel (%p595) target = $region64
        $region63: #{tpu_custom_call.1} parent=39 // pred_region
          %s598 = smul.u32 4, %s28
          %s600 = ssub.s32 512, 512
          %601 = vsyncadd %s591, %s600
          %s602 = smul.addr %s598, 128
          %s603 = scalar_lea.hbm %s5, %s602
          %s605 = sshll.u32 %s594, 4
          %s606 = int_to_ptr.vmem [resolvable:$true] %s605
          %608 = dma.vmem_to_hbm [thread:$0]  %s606, 512, %s603, %s591
        $region64: #{tpu_custom_call.1} parent=39 // pred_fallthru
          _
      $region40: #{tpu_custom_call.1} parent=5 // pred_fallthru
        _
      %p609 = scmp.le.s32.totalorder 2, %s23
      // Predicated region
      $region65: #{tpu_custom_call.1} parent=5 // pred_check
        %p610 = pneg %p609
      $region66: #{tpu_custom_call.1} parent=5 // pred_check_branch
        %612 = sbr.rel (%p610) target = $region68
      $region67: #{tpu_custom_call.1} parent=5 // pred_region
        %s613 = ssub.s32 %s23, 2
        // Predicated region
        $region69: #{tpu_custom_call.1} parent=67 // pred_check
          %p614 = pneg %p182
        $region70: #{tpu_custom_call.1} parent=67 // pred_check_branch
          %616 = sbr.rel (%p614) target = $region72
        $region71: #{tpu_custom_call.1} parent=67 // pred_region
          %s617 = sand.u32 %s167, 1
          %s618 = scalar_lea.sflag [#allocation4], %s617
          %s619 = sand.u32 %s167, 1
          %s620 = smul.addr %s619, 32
          %s621 = scalar_lea.vmem [#allocation11], %s620
          %622 = dma.done %s618, 512
        $region72: #{tpu_custom_call.1} parent=67 // pred_fallthru
          _
      $region68: #{tpu_custom_call.1} parent=5 // pred_fallthru
        _
    $region6: #{tpu_custom_call.1} parent=1 // loop_footer
      %s27 = sadd.s32 1, %s23
    $region7: #{tpu_custom_call.1} parent=1 // loop_footer_branch
      %22 = sbr.rel target = $region3
    $region8: #{tpu_custom_call.1} parent=1 // loop_exit
      _
    %623 = vsyncpa [#allocation3], 1
    %s624 = scalar_lea.sflag [#allocation3], 1
    %625 = vsyncpa %s624, 1
    %626 = vsyncpa [#allocation6], 1
    %s627 = scalar_lea.sflag [#allocation6], 1
    %628 = vsyncpa %s627, 1
    %629 = vsyncpa [#allocation9], 1
    %s630 = scalar_lea.sflag [#allocation9], 1
    %631 = vsyncpa %s630, 1
    %632 = vsyncpa [#allocation4], 1
    %s633 = scalar_lea.sflag [#allocation4], 1
    %634 = vsyncpa %s633, 1

</llo_original>
